<compile_context>
chip_gen: v7x
topology: tpu7x:2x2x1
jax: 0.10.0
libtpu: 0.0.40
codegen_flags: <defaults>
</compile_context>

<pallas_src>
import functools

import jax
import jax.numpy as jnp
from jax.experimental import pallas as pl
from jax.experimental.pallas import tpu as pltpu


def _adaptive_lora_kernel(x_ref, w_ref, b_ref, a_ref, bl_ref, o_ref,
                          acc_ref, xa_ref, *, scaling):
    """One (batch-tile, out-tile, k-tile) grid step.

    x_ref : [tb, tk]    input tile
    w_ref : [tk, tn]    pre-transposed base weight tile
    b_ref : [1,  tn]    bias tile
    a_ref : [tk, r]     pre-transposed lora_A tile
    bl_ref: [r,  tn]    pre-transposed lora_B tile
    o_ref : [tb, tn]    output tile
    acc_ref: [tb, tn]   f32 accumulator (base path, bias folded into init)
    xa_ref : [tb, r]    f32 accumulator for x @ A.T
    """
    k = pl.program_id(2)
    nk = pl.num_programs(2)

    @pl.when(k == 0)
    def _init():
        # Fold the bias add into accumulator init (free — already gated on k==0).
        acc_ref[...] = jnp.broadcast_to(
            b_ref[...].astype(jnp.float32), acc_ref.shape)
        xa_ref[...] = jnp.zeros_like(xa_ref)

    x = x_ref[...]
    # Base path: partial x @ W.T for this K slab.
    acc_ref[...] += jnp.dot(x, w_ref[...], preferred_element_type=jnp.float32)
    # LoRA down-projection: partial x @ A.T (rank dim only as output of a
    # contraction; the K=r matmul happens once, in the epilogue).
    xa_ref[...] += jnp.dot(x, a_ref[...], preferred_element_type=jnp.float32)

    @pl.when(k == nk - 1)
    def _finalize():
        lora = jnp.dot(xa_ref[...].astype(bl_ref.dtype), bl_ref[...],
                       preferred_element_type=jnp.float32)
        o_ref[...] = (acc_ref[...]
                      + jnp.float32(scaling) * lora).astype(o_ref.dtype)


def _pick_tile(dim, target, quantum):
    """Largest t <= min(target, dim), multiple of `quantum`, dividing `dim`;
    falls back to the full dim (always legal for BlockSpec)."""
    t = (min(target, dim) // quantum) * quantum
    while t >= quantum:
        if dim % t == 0:
            return t
        t -= quantum
    return dim


def adaptive_lora_linear(x, w, b, lora_a, lora_b, scaling, *,
                         tb=None, tn=None, tk=None, compute_dtype=None):
    """Fused base-linear + LoRA forward.

    x:      [batch, in_features]
    w:      [out_features, in_features]   (PyTorch nn.Linear layout)
    b:      [out_features]
    lora_a: [r, in_features]
    lora_b: [out_features, r]
    """
    batch, in_f = x.shape
    out_f, _ = w.shape
    r = lora_a.shape[0]
    out_dtype = x.dtype

    # One-time layout plumbing in the wrapper: MXU-friendly [K, N] weights,
    # no in-kernel transposes, no transposed VMEM copies.
    w_t = jnp.transpose(w)        # [in_f, out_f]
    a_t = jnp.transpose(lora_a)   # [in_f, r]
    b_t = jnp.transpose(lora_b)   # [r, out_f]
    bias2d = b.reshape(1, out_f).astype(jnp.float32)

    if compute_dtype is not None:
        x = x.astype(compute_dtype)
        w_t = w_t.astype(compute_dtype)
        a_t = a_t.astype(compute_dtype)
        b_t = b_t.astype(compute_dtype)

    # Tile selection: batch tile multiple of 8 (f32) / 16 (bf16), N / K tiles
    # multiples of 128 (lane width) — or the full dim when it is small.
    row_q = 16 if x.dtype == jnp.bfloat16 else 8
    if tb is None:
        tb = _pick_tile(batch, 256, row_q)
    if tn is None:
        tn = _pick_tile(out_f, 256, 128)
    if tk is None:
        tk = _pick_tile(in_f, 512, 128)
    assert batch % tb == 0 and out_f % tn == 0 and in_f % tk == 0

    grid = (batch // tb, out_f // tn, in_f // tk)

    kernel = functools.partial(_adaptive_lora_kernel, scaling=float(scaling))

    return pl.pallas_call(
        kernel,
        out_shape=jax.ShapeDtypeStruct((batch, out_f), out_dtype),
        grid_spec=pltpu.PrefetchScalarGridSpec(
            num_scalar_prefetch=0,
            grid=grid,
            in_specs=[
                pl.BlockSpec((tb, tk), lambda i, j, k: (i, k)),   # x tile
                pl.BlockSpec((tk, tn), lambda i, j, k: (k, j)),   # W.T tile
                pl.BlockSpec((1, tn), lambda i, j, k: (0, j)),    # bias tile
                pl.BlockSpec((tk, r), lambda i, j, k: (k, 0)),    # A.T tile
                pl.BlockSpec((r, tn), lambda i, j, k: (0, j)),    # B.T tile
            ],
            out_specs=pl.BlockSpec((tb, tn), lambda i, j, k: (i, j)),
            scratch_shapes=[
                pltpu.VMEM((tb, tn), jnp.float32),   # base accumulator
                pltpu.VMEM((tb, r), jnp.float32),    # x @ A.T accumulator
            ],
        ),
        compiler_params=pltpu.CompilerParams(
            dimension_semantics=("parallel", "parallel", "arbitrary")),
    )(x, w_t, bias2d, a_t, b_t)


if __name__ == "__main__":
    # Shapes consistent with nn.Linear(256, 256) wrapped by
    # AdaptiveLoRALinear(r=4, alpha=32). out_features is a multiple of 128 so
    # output stores are lane-dense.
    batch, in_features, out_features, r, alpha = 16, 256, 256, 4, 32
    scaling = alpha / r

    key = jax.random.PRNGKey(0)
    kx, kw, kb, ka, kbl = jax.random.split(key, 5)

    x = jax.random.normal(kx, (batch, in_features), dtype=jnp.float32)
    w = jax.random.normal(kw, (out_features, in_features), dtype=jnp.float32) * 0.05
    b = jax.random.normal(kb, (out_features,), dtype=jnp.float32) * 0.1
    lora_a = jax.random.normal(ka, (r, in_features), dtype=jnp.float32) * 0.01
    lora_b = jax.random.normal(kbl, (out_features, r), dtype=jnp.float32) * 0.01

    # Pure-JAX reference (eval-mode dropout = identity).
    ref = x @ w.T + b + scaling * ((x @ lora_a.T) @ lora_b.T)

    # 1) f32 path with an explicit multi-step grid (2 batch x 2 N x 2 K tiles)
    #    exercising the accumulator init/finalize and both parallel axes.
    out = adaptive_lora_linear(x, w, b, lora_a, lora_b, scaling,
                               tb=8, tn=128, tk=128)
    out = jax.block_until_ready(out)
    assert jnp.allclose(out, ref, atol=1e-4, rtol=1e-4), "f32 mismatch vs reference"

    # 2) bf16 MXU feed with f32 accumulation (default tile selection).
    out_bf16 = adaptive_lora_linear(x, w, b, lora_a, lora_b, scaling,
                                    compute_dtype=jnp.bfloat16)
    out_bf16 = jax.block_until_ready(out_bf16)
    assert jnp.allclose(out_bf16, ref, atol=1e-1, rtol=1e-1), "bf16 mismatch vs reference"

    print("KERNEL_OK")
</pallas_src>

<mosaic_0001>
module attributes {stable_mosaic.version = 11 : i64} {
  func.func @_adaptive_lora_kernel(%arg0: i32, %arg1: i32, %arg2: i32, %arg3: memref<8x128xf32, #tpu.memory_space<vmem>>, %arg4: memref<128x128xf32, #tpu.memory_space<vmem>>, %arg5: memref<1x128xf32, #tpu.memory_space<vmem>>, %arg6: memref<128x4xf32, #tpu.memory_space<vmem>>, %arg7: memref<4x128xf32, #tpu.memory_space<vmem>>, %arg8: memref<8x128xf32, #tpu.memory_space<vmem>>, %arg9: memref<8x128xf32, #tpu.memory_space<vmem>>, %arg10: memref<8x4xf32, #tpu.memory_space<vmem>>) attributes {dimension_semantics = [#tpu.dimension_semantics<parallel>, #tpu.dimension_semantics<parallel>, #tpu.dimension_semantics<arbitrary>], iteration_bounds = array<i64: 2, 2, 2>, scalar_prefetch = 0 : i64, scratch_operands = 2 : i64, tpu.core_type = #tpu.core_type<tc>, window_params = [{transform_indices = @transform_0, window_bounds = array<i64: 8, 128>}, {transform_indices = @transform_1, window_bounds = array<i64: 128, 128>}, {transform_indices = @transform_2, window_bounds = array<i64: 1, 128>}, {transform_indices = @transform_3, window_bounds = array<i64: 128, 4>}, {transform_indices = @transform_4, window_bounds = array<i64: 4, 128>}, {transform_indices = @transform_5, window_bounds = array<i64: 8, 128>}]} {
    %c0_i32 = arith.constant 0 : i32
    %0 = arith.cmpi eq, %arg2, %c0_i32 : i32
    %1 = arith.extui %0 : i1 to i32
    %c0_i32_0 = arith.constant 0 : i32
    %2 = arith.cmpi ne, %1, %c0_i32_0 : i32
    scf.if %2 {
      %c0_16 = arith.constant 0 : index
      %c0_17 = arith.constant 0 : index
      %17 = vector.load %arg5[%c0_16, %c0_17] : memref<1x128xf32, #tpu.memory_space<vmem>>, vector<1x128xf32>
      %18 = vector.shape_cast %17 : vector<1x128xf32> to vector<1x128xf32>
      %19 = vector.broadcast %18 : vector<1x128xf32> to vector<8x128xf32>
      %c0_18 = arith.constant 0 : index
      %c0_19 = arith.constant 0 : index
      %20 = vector.load %arg9[%c0_18, %c0_19] : memref<8x128xf32, #tpu.memory_space<vmem>>, vector<8x128xf32>
      tpu.vector_store %arg9[%c0_18, %c0_19], %19 {strides = array<i32>} : memref<8x128xf32, #tpu.memory_space<vmem>>, vector<8x128xf32>,
      %cst_20 = arith.constant 0.000000e+00 : f32
      %21 = vector.broadcast %cst_20 : f32 to vector<8x4xf32>
      %c0_21 = arith.constant 0 : index
      %c0_22 = arith.constant 0 : index
      %22 = vector.load %arg10[%c0_21, %c0_22] : memref<8x4xf32, #tpu.memory_space<vmem>>, vector<8x4xf32>
      tpu.vector_store %arg10[%c0_21, %c0_22], %21 {strides = array<i32>} : memref<8x4xf32, #tpu.memory_space<vmem>>, vector<8x4xf32>,
    } else {
    }
    %c0 = arith.constant 0 : index
    %c0_1 = arith.constant 0 : index
    %3 = vector.load %arg3[%c0, %c0_1] : memref<8x128xf32, #tpu.memory_space<vmem>>, vector<8x128xf32>
    %c0_2 = arith.constant 0 : index
    %c0_3 = arith.constant 0 : index
    %4 = vector.load %arg9[%c0_2, %c0_3] : memref<8x128xf32, #tpu.memory_space<vmem>>, vector<8x128xf32>
    %c0_4 = arith.constant 0 : index
    %c0_5 = arith.constant 0 : index
    %5 = vector.load %arg4[%c0_4, %c0_5] : memref<128x128xf32, #tpu.memory_space<vmem>>, vector<128x128xf32>
    %cst = arith.constant dense<0.000000e+00> : vector<8x128xf32>
    %6 = tpu.matmul %3, %5, %cst {dimension_numbers = #tpu.dot_dimension_numbers<[1], [0], [0], [1], [0, 0, 1, 1], [], []>} : vector<8x128xf32>, vector<128x128xf32>, vector<8x128xf32> -> vector<8x128xf32>
    %7 = arith.addf %4, %6 : vector<8x128xf32>
    %c0_6 = arith.constant 0 : index
    %c0_7 = arith.constant 0 : index
    %8 = vector.load %arg9[%c0_6, %c0_7] : memref<8x128xf32, #tpu.memory_space<vmem>>, vector<8x128xf32>
    tpu.vector_store %arg9[%c0_6, %c0_7], %7 {strides = array<i32>} : memref<8x128xf32, #tpu.memory_space<vmem>>, vector<8x128xf32>,
    %c0_8 = arith.constant 0 : index
    %c0_9 = arith.constant 0 : index
    %9 = vector.load %arg10[%c0_8, %c0_9] : memref<8x4xf32, #tpu.memory_space<vmem>>, vector<8x4xf32>
    %c0_10 = arith.constant 0 : index
    %c0_11 = arith.constant 0 : index
    %10 = vector.load %arg6[%c0_10, %c0_11] : memref<128x4xf32, #tpu.memory_space<vmem>>, vector<128x4xf32>
    %cst_12 = arith.constant dense<0.000000e+00> : vector<8x4xf32>
    %11 = tpu.matmul %3, %10, %cst_12 {dimension_numbers = #tpu.dot_dimension_numbers<[1], [0], [0], [1], [0, 0, 1, 1], [], []>} : vector<8x128xf32>, vector<128x4xf32>, vector<8x4xf32> -> vector<8x4xf32>
    %12 = arith.addf %9, %11 : vector<8x4xf32>
    %c0_13 = arith.constant 0 : index
    %c0_14 = arith.constant 0 : index
    %13 = vector.load %arg10[%c0_13, %c0_14] : memref<8x4xf32, #tpu.memory_space<vmem>>, vector<8x4xf32>
    tpu.vector_store %arg10[%c0_13, %c0_14], %12 {strides = array<i32>} : memref<8x4xf32, #tpu.memory_space<vmem>>, vector<8x4xf32>,
    %c1_i32 = arith.constant 1 : i32
    %14 = arith.cmpi eq, %arg2, %c1_i32 : i32
    %15 = arith.extui %14 : i1 to i32
    %c0_i32_15 = arith.constant 0 : i32
    %16 = arith.cmpi ne, %15, %c0_i32_15 : i32
    scf.if %16 {
      %c0_16 = arith.constant 0 : index
      %c0_17 = arith.constant 0 : index
      %17 = vector.load %arg10[%c0_16, %c0_17] : memref<8x4xf32, #tpu.memory_space<vmem>>, vector<8x4xf32>
      %c0_18 = arith.constant 0 : index
      %c0_19 = arith.constant 0 : index
      %18 = vector.load %arg7[%c0_18, %c0_19] : memref<4x128xf32, #tpu.memory_space<vmem>>, vector<4x128xf32>
      %cst_20 = arith.constant dense<0.000000e+00> : vector<8x128xf32>
      %19 = tpu.matmul %17, %18, %cst_20 {dimension_numbers = #tpu.dot_dimension_numbers<[1], [0], [0], [1], [0, 0, 1, 1], [], []>} : vector<8x4xf32>, vector<4x128xf32>, vector<8x128xf32> -> vector<8x128xf32>
      %c0_21 = arith.constant 0 : index
      %c0_22 = arith.constant 0 : index
      %20 = vector.load %arg9[%c0_21, %c0_22] : memref<8x128xf32, #tpu.memory_space<vmem>>, vector<8x128xf32>
      %cst_23 = arith.constant 8.000000e+00 : f32
      %21 = vector.broadcast %cst_23 : f32 to vector<8x128xf32>
      %22 = arith.mulf %21, %19 : vector<8x128xf32>
      %23 = arith.addf %20, %22 : vector<8x128xf32>
      %c0_24 = arith.constant 0 : index
      %c0_25 = arith.constant 0 : index
      %24 = vector.load %arg8[%c0_24, %c0_25] : memref<8x128xf32, #tpu.memory_space<vmem>>, vector<8x128xf32>
      tpu.vector_store %arg8[%c0_24, %c0_25], %23 {strides = array<i32>} : memref<8x128xf32, #tpu.memory_space<vmem>>, vector<8x128xf32>,
    } else {
    }
    return
  }
  func.func @transform_0(%arg0: i32, %arg1: i32, %arg2: i32) -> (i32, i32) {
    %c0_i32 = arith.constant 0 : i32
    return %arg0, %arg2 : i32, i32
  }
  func.func @transform_1(%arg0: i32, %arg1: i32, %arg2: i32) -> (i32, i32) {
    %c0_i32 = arith.constant 0 : i32
    return %arg2, %arg1 : i32, i32
  }
  func.func @transform_2(%arg0: i32, %arg1: i32, %arg2: i32) -> (i32, i32) {
    %c0_i32 = arith.constant 0 : i32
    %c0_i32_0 = arith.constant 0 : i32
    return %c0_i32, %arg1 : i32, i32
  }
  func.func @transform_3(%arg0: i32, %arg1: i32, %arg2: i32) -> (i32, i32) {
    %c0_i32 = arith.constant 0 : i32
    %c0_i32_0 = arith.constant 0 : i32
    return %arg2, %c0_i32 : i32, i32
  }
  func.func @transform_4(%arg0: i32, %arg1: i32, %arg2: i32) -> (i32, i32) {
    %c0_i32 = arith.constant 0 : i32
    %c0_i32_0 = arith.constant 0 : i32
    return %c0_i32, %arg1 : i32, i32
  }
  func.func @transform_5(%arg0: i32, %arg1: i32, %arg2: i32) -> (i32, i32) {
    %c0_i32 = arith.constant 0 : i32
    return %arg0, %arg1 : i32, i32
  }
}

</mosaic_0001>

<llo_original>
// kernel: tpu_custom_call.1
$region0: #{tpu_custom_call.1}
  #allocation0 [shape = 'u32[]', space=smem, size = 0x4, offset = 0x4, fixed_abs, tag = 'smem constant byte address 0x4 - core index']
  #allocation1 [shape = 'u32[144,128]{1,0:T(1,128)}', space=vmem, size = 0x12000, scoped, tag = 'internal scratch']
  #allocation2 [shape = 'f32[8,128]{1,0:T(8,128)}', space=vmem, size = 0x1000, scoped, tag = 'scratch operand']
  #allocation3 [shape = 'f32[8,4]{1,0:T(8,128)}', space=vmem, size = 0x1000, scoped, tag = 'scratch operand']
  %s0 = inlined_call_operand.vmem [shape: f32[16,256], index: 0, kind: input, shape index: {}]
  %s1 = inlined_call_operand.hbm [shape: f32[256,256], index: 1, kind: input, shape index: {}]
  %s2 = inlined_call_operand.vmem [shape: f32[1,256], index: 2, kind: input, shape index: {}]
  %s3 = inlined_call_operand.vmem [shape: f32[256,4], index: 3, kind: input, shape index: {}]
  %s4 = inlined_call_operand.vmem [shape: f32[4,256], index: 4, kind: input, shape index: {}]
  %s5 = inlined_call_operand.hbm [shape: f32[16,256], index: 5, kind: output, shape index: {}]
  %s6 = sld [smem:[#allocation0]]
  $region65: #{tpu_custom_call.1} parent=0
    _
  %s8 = ssub.s32 1, %s6
  %s9 = scalar_select 0, %s8, %s6
  $region1: #{tpu_custom_call.1} parent=0
    #allocation4 [shape = 'u8[131072]{0}', space=vmem, size = 0x20000, scoped, tag = 'input window, operand 1']
    #allocation5 [shape = 's32[2]{0}', space=sflag, size = 0x8, scoped, tag = 'scoped memory for tpu_custom_call.1']
    #allocation6 [shape = 's32[2]{0}', space=sflag, size = 0x8, scoped, tag = 'scoped memory for tpu_custom_call.1']
    #allocation7 [shape = 'u8[8192]{0}', space=vmem, size = 0x2000, scoped, tag = 'output window, operand 0']
    %10 = vsyncpa [#allocation5], 0
    %s11 = scalar_lea.sflag [#allocation5], 1
    %12 = vsyncpa %s11, 0
    %13 = vsyncpa [#allocation6], 0
    %s14 = scalar_lea.sflag [#allocation6], 1
    %15 = vsyncpa %s14, 0
    loop: start=0, step=1, limit=10
    $region2: #{tpu_custom_call.1} parent=1 // loop_pre_header
      _
    $region3: #{tpu_custom_call.1} parent=1 // loop_header
      %s17 = sphi 0, %s21
      %p18 = scmp.ge.s32.totalorder %s17, 10
      %s24 = sphi 0, %s43
      %s25 = sphi 0, %s39
      %s26 = sphi 0, %s35
      %s27 = sphi 0, %s24
      %s28 = sphi 0, %s25
      %s29 = sphi 0, %s26
      %s30 = sphi 0, %s27
      %s31 = sphi 0, %s28
      %s32 = sphi 0, %s29
      %s48 = sphi 0, %s50
      %s51 = sphi 0, %s48
      %s52 = sphi 0, %s51
      %s68 = sphi 0, %s52
      %s76 = sphi 0, %s78
      %s79 = sphi 0, %s76
      %s80 = sphi 0, %s79
      %s96 = sphi 0, %s80
      %s102 = sphi 0, %s104
      %s105 = sphi 0, %s102
      %s106 = sphi 0, %s105
      %s122 = sphi 0, %s106
      %s128 = sphi 0, %s130
      %s131 = sphi 0, %s128
      %s132 = sphi 0, %s131
      %s148 = sphi 0, %s132
      %s154 = sphi 0, %s156
      %s157 = sphi 0, %s154
      %s158 = sphi 0, %s157
      %s174 = sphi 0, %s158
      %s182 = sphi 0, %s184
      %s185 = sphi 0, %s182
      %s186 = sphi 0, %s185
      %s202 = sphi 0, %s186
    $region4: #{tpu_custom_call.1} parent=1 // loop_header_branch
      %20 = sbr.rel (%p18) target = $region8
    $region5: #{tpu_custom_call.1} parent=1 // loop_body
      %s22 = ssub.s32 %s17, 1
      %s23 = ssub.s32 %s17, 2
      %s33 = sadd.s32 1, %s26
      %p34 = scmp.ge.s32.totalorder %s33, 2
      %s35 = scalar_select %p34, 0, %s33
      %s36 = sadd.s32 1, %s25
      %s37 = scalar_select %p34, %s36, %s25
      %p38 = scmp.ge.s32.totalorder %s37, 2
      %s39 = scalar_select %p38, 0, %s37
      %s40 = sadd.s32 1, %s24
      %s41 = scalar_select %p38, %s40, %s24
      %p42 = scmp.ge.s32.totalorder %s41, 2
      %s43 = scalar_select %p42, 0, %s41
      %s44 = ssub.s32 %s24, %s43
      %s45 = ssub.s32 %s26, %s35
      %s46 = sor.u32 %s44, %s45
      %p47 = scmp.eq.s32.totalorder %s46, 0
      %s49 = sadd.s32 %s48, 1
      %s50 = scalar_select %p47, %s48, %s49
      %p53 = pneg %p47
      %p54 = scmp.eq.s32.totalorder %s17, 7
      %p55 = por %p53, %p54
      %p56 = scmp.ne.s32.totalorder %s48, %s51
      %p57 = scmp.eq.s32.totalorder %s17, 0
      %p58 = por %p56, %p57
      %p59 = scmp.ne.s32.totalorder %s48, %s51
      %p60 = scmp.eq.s32.totalorder %s22, 7
      %p61 = por %p59, %p60
      %p62 = scmp.ne.s32.totalorder %s51, %s52
      %p63 = scmp.eq.s32.totalorder %s22, 0
      %p64 = por %p62, %p63
      %p65 = scmp.ne.s32.totalorder %s51, %s52
      %p66 = scmp.eq.s32.totalorder %s23, 7
      %p67 = por %p65, %p66
      %p69 = scmp.ne.s32.totalorder %s52, %s68
      %p70 = scmp.eq.s32.totalorder %s23, 0
      %p71 = por %p69, %p70
      %s72 = ssub.s32 %s26, %s35
      %s73 = ssub.s32 %s25, %s39
      %s74 = sor.u32 %s72, %s73
      %p75 = scmp.eq.s32.totalorder %s74, 0
      %s77 = sadd.s32 %s76, 1
      %s78 = scalar_select %p75, %s76, %s77
      %p81 = pneg %p75
      %p82 = scmp.eq.s32.totalorder %s17, 7
      %p83 = por %p81, %p82
      %p84 = scmp.ne.s32.totalorder %s76, %s79
      %p85 = scmp.eq.s32.totalorder %s17, 0
      %p86 = por %p84, %p85
      %p87 = scmp.ne.s32.totalorder %s76, %s79
      %p88 = scmp.eq.s32.totalorder %s22, 7
      %p89 = por %p87, %p88
      %p90 = scmp.ne.s32.totalorder %s79, %s80
      %p91 = scmp.eq.s32.totalorder %s22, 0
      %p92 = por %p90, %p91
      %p93 = scmp.ne.s32.totalorder %s79, %s80
      %p94 = scmp.eq.s32.totalorder %s23, 7
      %p95 = por %p93, %p94
      %p97 = scmp.ne.s32.totalorder %s80, %s96
      %p98 = scmp.eq.s32.totalorder %s23, 0
      %p99 = por %p97, %p98
      %s100 = ssub.s32 %s25, %s39
      %p101 = scmp.eq.s32.totalorder %s100, 0
      %s103 = sadd.s32 %s102, 1
      %s104 = scalar_select %p101, %s102, %s103
      %p107 = pneg %p101
      %p108 = scmp.eq.s32.totalorder %s17, 7
      %p109 = por %p107, %p108
      %p110 = scmp.ne.s32.totalorder %s102, %s105
      %p111 = scmp.eq.s32.totalorder %s17, 0
      %p112 = por %p110, %p111
      %p113 = scmp.ne.s32.totalorder %s102, %s105
      %p114 = scmp.eq.s32.totalorder %s22, 7
      %p115 = por %p113, %p114
      %p116 = scmp.ne.s32.totalorder %s105, %s106
      %p117 = scmp.eq.s32.totalorder %s22, 0
      %p118 = por %p116, %p117
      %p119 = scmp.ne.s32.totalorder %s105, %s106
      %p120 = scmp.eq.s32.totalorder %s23, 7
      %p121 = por %p119, %p120
      %p123 = scmp.ne.s32.totalorder %s106, %s122
      %p124 = scmp.eq.s32.totalorder %s23, 0
      %p125 = por %p123, %p124
      %s126 = ssub.s32 %s26, %s35
      %p127 = scmp.eq.s32.totalorder %s126, 0
      %s129 = sadd.s32 %s128, 1
      %s130 = scalar_select %p127, %s128, %s129
      %p133 = pneg %p127
      %p134 = scmp.eq.s32.totalorder %s17, 7
      %p135 = por %p133, %p134
      %p136 = scmp.ne.s32.totalorder %s128, %s131
      %p137 = scmp.eq.s32.totalorder %s17, 0
      %p138 = por %p136, %p137
      %p139 = scmp.ne.s32.totalorder %s128, %s131
      %p140 = scmp.eq.s32.totalorder %s22, 7
      %p141 = por %p139, %p140
      %p142 = scmp.ne.s32.totalorder %s131, %s132
      %p143 = scmp.eq.s32.totalorder %s22, 0
      %p144 = por %p142, %p143
      %p145 = scmp.ne.s32.totalorder %s131, %s132
      %p146 = scmp.eq.s32.totalorder %s23, 7
      %p147 = por %p145, %p146
      %p149 = scmp.ne.s32.totalorder %s132, %s148
      %p150 = scmp.eq.s32.totalorder %s23, 0
      %p151 = por %p149, %p150
      %s152 = ssub.s32 %s25, %s39
      %p153 = scmp.eq.s32.totalorder %s152, 0
      %s155 = sadd.s32 %s154, 1
      %s156 = scalar_select %p153, %s154, %s155
      %p159 = pneg %p153
      %p160 = scmp.eq.s32.totalorder %s17, 7
      %p161 = por %p159, %p160
      %p162 = scmp.ne.s32.totalorder %s154, %s157
      %p163 = scmp.eq.s32.totalorder %s17, 0
      %p164 = por %p162, %p163
      %p165 = scmp.ne.s32.totalorder %s154, %s157
      %p166 = scmp.eq.s32.totalorder %s22, 7
      %p167 = por %p165, %p166
      %p168 = scmp.ne.s32.totalorder %s157, %s158
      %p169 = scmp.eq.s32.totalorder %s22, 0
      %p170 = por %p168, %p169
      %p171 = scmp.ne.s32.totalorder %s157, %s158
      %p172 = scmp.eq.s32.totalorder %s23, 7
      %p173 = por %p171, %p172
      %p175 = scmp.ne.s32.totalorder %s158, %s174
      %p176 = scmp.eq.s32.totalorder %s23, 0
      %p177 = por %p175, %p176
      %s178 = ssub.s32 %s24, %s43
      %s179 = ssub.s32 %s25, %s39
      %s180 = sor.u32 %s178, %s179
      %p181 = scmp.eq.s32.totalorder %s180, 0
      %s183 = sadd.s32 %s182, 1
      %s184 = scalar_select %p181, %s182, %s183
      %p187 = pneg %p181
      %p188 = scmp.eq.s32.totalorder %s17, 7
      %p189 = por %p187, %p188
      %p190 = scmp.ne.s32.totalorder %s182, %s185
      %p191 = scmp.eq.s32.totalorder %s17, 0
      %p192 = por %p190, %p191
      %p193 = scmp.ne.s32.totalorder %s182, %s185
      %p194 = scmp.eq.s32.totalorder %s22, 7
      %p195 = por %p193, %p194
      %p196 = scmp.ne.s32.totalorder %s185, %s186
      %p197 = scmp.eq.s32.totalorder %s22, 0
      %p198 = por %p196, %p197
      %p199 = scmp.ne.s32.totalorder %s185, %s186
      %p200 = scmp.eq.s32.totalorder %s23, 7
      %p201 = por %p199, %p200
      %p203 = scmp.ne.s32.totalorder %s186, %s202
      %p204 = scmp.eq.s32.totalorder %s23, 0
      %p205 = por %p203, %p204
      %p206 = scmp.le.s32.totalorder 1, %s17
      %p207 = scmp.lt.s32.totalorder %s17, 9
      %p208 = pnand %p206, %p207
      %p209 = pneg %p208
      // Predicated region
      $region9: #{tpu_custom_call.1} parent=5 // pred_check
        _
      $region10: #{tpu_custom_call.1} parent=5 // pred_check_branch
        %211 = sbr.rel (%p208) target = $region12
      $region11: #{tpu_custom_call.1} parent=5 // pred_region
        %s212 = ssub.s32 %s17, 1
      $region12: #{tpu_custom_call.1} parent=5 // pred_fallthru
        _
      %p213 = scmp.lt.s32.totalorder %s17, 8
      // Predicated region
      $region13: #{tpu_custom_call.1} parent=5 // pred_check
        %p214 = pneg %p213
      $region14: #{tpu_custom_call.1} parent=5 // pred_check_branch
        %216 = sbr.rel (%p214) target = $region16
      $region15: #{tpu_custom_call.1} parent=5 // pred_region
        // Predicated region
        $region17: #{tpu_custom_call.1} parent=15 // pred_check
          %p217 = pneg %p58
        $region18: #{tpu_custom_call.1} parent=15 // pred_check_branch
          %219 = sbr.rel (%p217) target = $region20
        $region19: #{tpu_custom_call.1} parent=15 // pred_region
          %p220 = scmp.lt.s32.totalorder %s24, 1
          %s221 = scalar_select %p220, %s24, 1
          %p222 = scmp.lt.s32.totalorder %s26, 1
          %s223 = scalar_select %p222, %s26, 1
          %s224 = smul.addr %s221, 2
          %s225 = sadd.s32 %s223, %s224
          %s226 = smul.addr %s225, 8
          %s227 = scalar_lea.vmem %s0, %s226
        $region20: #{tpu_custom_call.1} parent=15 // pred_fallthru
          _
        // Predicated region
        $region21: #{tpu_custom_call.1} parent=15 // pred_check
          %p228 = pneg %p86
        $region22: #{tpu_custom_call.1} parent=15 // pred_check_branch
          %230 = sbr.rel (%p228) target = $region24
        $region23: #{tpu_custom_call.1} parent=15 // pred_region
          %s231 = sand.u32 %s76, 1
          %s232 = scalar_lea.sflag [#allocation5], %s231
          %s233 = sand.u32 %s76, 1
          %s234 = smul.addr %s233, 128
          %s235 = scalar_lea.vmem [#allocation4], %s234
          %s236 = smul.u32 16, %s26
          %s238 = ssub.s32 2048, 2048
          %239 = vsyncadd %s232, %s238
          %s240 = smul.addr %s236, 2
          %s241 = sadd.s32 %s25, %s240
          %s242 = smul.addr %s241, 128
          %s243 = scalar_lea.hbm %s1, %s242
          %s244 = sshll.u32 %s235, 4
          %s245 = int_to_ptr.vmem [resolvable:$true] %s244
          %250 = dma.hbm_to_vmem [thread:$0]  %s243, 2048, %s245, %s232, 256, 128, 8
        $region24: #{tpu_custom_call.1} parent=15 // pred_fallthru
          _
        // Predicated region
        $region25: #{tpu_custom_call.1} parent=15 // pred_check
          %p251 = pneg %p112
        $region26: #{tpu_custom_call.1} parent=15 // pred_check_branch
          %253 = sbr.rel (%p251) target = $region28
        $region27: #{tpu_custom_call.1} parent=15 // pred_region
          %p254 = scmp.lt.s32.totalorder %s25, 1
          %s255 = scalar_select %p254, %s25, 1
          %s256 = scalar_lea.vmem %s2, %s255
        $region28: #{tpu_custom_call.1} parent=15 // pred_fallthru
          _
        // Predicated region
        $region29: #{tpu_custom_call.1} parent=15 // pred_check
          %p257 = pneg %p138
        $region30: #{tpu_custom_call.1} parent=15 // pred_check_branch
          %259 = sbr.rel (%p257) target = $region32
        $region31: #{tpu_custom_call.1} parent=15 // pred_region
          %s260 = smul.u32 16, %s26
          %p261 = scmp.lt.s32.totalorder %s260, 31
          %s262 = scalar_select %p261, %s260, 31
          %s263 = smul.addr %s262, 8
          %s264 = scalar_lea.vmem %s3, %s263
          %s265 = smul.u32 16, %s26
        $region32: #{tpu_custom_call.1} parent=15 // pred_fallthru
          _
        // Predicated region
        $region33: #{tpu_custom_call.1} parent=15 // pred_check
          %p266 = pneg %p164
        $region34: #{tpu_custom_call.1} parent=15 // pred_check_branch
          %268 = sbr.rel (%p266) target = $region36
        $region35: #{tpu_custom_call.1} parent=15 // pred_region
          %p269 = scmp.lt.s32.totalorder %s25, 1
          %s270 = scalar_select %p269, %s25, 1
          %s271 = smul.addr %s270, 4
          %s272 = scalar_lea.vmem %s4, %s271
        $region36: #{tpu_custom_call.1} parent=15 // pred_fallthru
          _
      $region16: #{tpu_custom_call.1} parent=5 // pred_fallthru
        _
      %p273 = scmp.le.s32.totalorder 1, %s17
      %p274 = scmp.lt.s32.totalorder %s17, 9
      %p275 = pnand %p273, %p274
      %p276 = pneg %p275
      // Predicated region
      $region37: #{tpu_custom_call.1} parent=5 // pred_check
        _
      $region38: #{tpu_custom_call.1} parent=5 // pred_check_branch
        %278 = sbr.rel (%p275) target = $region40
      $region39: #{tpu_custom_call.1} parent=5 // pred_region
        %s279 = ssub.s32 %s17, 1
        %s280 = sand.u32 %s79, 1
        %s281 = scalar_lea.sflag [#allocation5], %s280
        %s282 = sand.u32 %s79, 1
        %s283 = smul.addr %s282, 128
        %s284 = scalar_lea.vmem [#allocation4], %s283
        // Predicated region
        $region41: #{tpu_custom_call.1} parent=39 // pred_check
          %p285 = pneg %p92
        $region42: #{tpu_custom_call.1} parent=39 // pred_check_branch
          %287 = sbr.rel (%p285) target = $region44
        $region43: #{tpu_custom_call.1} parent=39 // pred_region
          %288 = dma.done %s281, 2048
        $region44: #{tpu_custom_call.1} parent=39 // pred_fallthru
          _
        %p289 = scmp.lt.s32.totalorder %s27, 1
        %s290 = scalar_select %p289, %s27, 1
        %p291 = scmp.lt.s32.totalorder %s29, 1
        %s292 = scalar_select %p291, %s29, 1
        %s293 = smul.addr %s290, 2
        %s294 = sadd.s32 %s292, %s293
        %s295 = smul.addr %s294, 8
        %s296 = scalar_lea.vmem %s0, %s295
        %p297 = pneg %p64
        %p298 = pneg %p61
        %s299 = sand.u32 %s79, 1
        %s300 = scalar_lea.sflag [#allocation5], %s299
        %s301 = sand.u32 %s79, 1
        %s302 = smul.addr %s301, 128
        %s303 = scalar_lea.vmem [#allocation4], %s302
        %p304 = pneg %p92
        %p305 = pneg %p89
        %p306 = scmp.lt.s32.totalorder %s28, 1
        %s307 = scalar_select %p306, %s28, 1
        %s308 = scalar_lea.vmem %s2, %s307
        %p309 = pneg %p118
        %p310 = pneg %p115
        %s311 = smul.u32 16, %s29
        %p312 = scmp.lt.s32.totalorder %s311, 31
        %s313 = scalar_select %p312, %s311, 31
        %s314 = smul.addr %s313, 8
        %s315 = scalar_lea.vmem %s3, %s314
        %p316 = pneg %p144
        %p317 = pneg %p141
        %p318 = scmp.lt.s32.totalorder %s28, 1
        %s319 = scalar_select %p318, %s28, 1
        %s320 = smul.addr %s319, 4
        %s321 = scalar_lea.vmem %s4, %s320
        %p322 = pneg %p170
        %p323 = pneg %p167
        %p324 = pneg %p198
        %p325 = pneg %p195
        %s326 = sand.u32 %s185, 1
        %s327 = scalar_lea.sflag [#allocation6], %s326
        %s328 = sand.u32 %s185, 1
        %s329 = smul.addr %s328, 8
        %s330 = scalar_lea.vmem [#allocation7], %s329
        %p331 = scmp.lt.s32.totalorder %s27, 1
        %s332 = scalar_select %p331, %s27, 1
        %p333 = scmp.lt.s32.totalorder %s29, 1
        %s334 = scalar_select %p333, %s29, 1
        %s335 = smul.addr %s332, 2
        %s336 = sadd.s32 %s334, %s335
        %s337 = smul.addr %s336, 8
        %s338 = scalar_lea.vmem %s0, %s337
        %s339 = smul.u32 16, %s29
        %p340 = scmp.lt.s32.totalorder %s28, 1
        %s341 = scalar_select %p340, %s28, 1
        %s342 = scalar_lea.vmem %s2, %s341
        %s343 = smul.u32 16, %s29
        %p344 = scmp.lt.s32.totalorder %s343, 31
        %s345 = scalar_select %p344, %s343, 31
        %s346 = smul.addr %s345, 8
        %s347 = scalar_lea.vmem %s3, %s346
        %s348 = smul.u32 16, %s29
        %p349 = scmp.lt.s32.totalorder %s28, 1
        %s350 = scalar_select %p349, %s28, 1
        %s351 = smul.addr %s350, 4
        %s352 = scalar_lea.vmem %s4, %s351
        %p353 = scmp.eq.s32.totalorder %s29, 0
        // Predicated region
        $region45: #{tpu_custom_call.1} parent=39 // pred_check
          %p354 = pneg %p353
        $region46: #{tpu_custom_call.1} parent=39 // pred_check_branch
          %356 = sbr.rel (%p354) target = $region48
        $region47: #{tpu_custom_call.1} parent=39 // pred_region
          %v357 = vld [vmem:[%s342] sm:$0x1]
          %v359 = vlaneseq
          %v360 = vshrl.u32 %v359, 7
          %v361 = vsub.s32 0, %v360
          %v362 = vrot.slane %v357, %v361
          %364 = vst [vmem:[#allocation2] sm:$0xff] %v362
          %vm365 = vcmask 31744
          %366 = vst.msk [vmem:[#allocation3] sm:$0xff] %vm365, 0.0
        $region48: #{tpu_custom_call.1} parent=39 // pred_fallthru
          _
        %v367 = vld [vmem:[%s338] sm:$0xff]
        %v368 = vld [vmem:[#allocation2] sm:$0xff]
        %v369 = vld [vmem:[%s284] sm:$0xff]
        %v370 = vld [vmem:[%s284 + $0x8] sm:$0xff]
        %v371 = vld [vmem:[%s284 + $0x10] sm:$0xff]
        %v372 = vld [vmem:[%s284 + $0x18] sm:$0xff]
        %v373 = vld [vmem:[%s284 + $0x20] sm:$0xff]
        %v374 = vld [vmem:[%s284 + $0x28] sm:$0xff]
        %v375 = vld [vmem:[%s284 + $0x30] sm:$0xff]
        %v376 = vld [vmem:[%s284 + $0x38] sm:$0xff]
        %v377 = vld [vmem:[%s284 + $0x40] sm:$0xff]
        %v378 = vld [vmem:[%s284 + $0x48] sm:$0xff]
        %v379 = vld [vmem:[%s284 + $0x50] sm:$0xff]
        %v380 = vld [vmem:[%s284 + $0x58] sm:$0xff]
        %v381 = vld [vmem:[%s284 + $0x60] sm:$0xff]
        %v382 = vld [vmem:[%s284 + $0x68] sm:$0xff]
        %v383 = vld [vmem:[%s284 + $0x70] sm:$0xff]
        %v384 = vld [vmem:[%s284 + $0x78] sm:$0xff]
        %385 = vmatprep.subr.mxu0 0.0
        %386 = vmatpush1.msra.mxu0 %v369
        %387 = vmatprep.subr.mxu0 0.0
        %388 = vmatpush1.msra.mxu0 %v370
        %389 = vmatprep.subr.mxu0 0.0
        %390 = vmatpush1.msra.mxu0 %v371
        %391 = vmatprep.subr.mxu0 0.0
        %392 = vmatpush1.msra.mxu0 %v372
        %393 = vmatprep.subr.mxu0 0.0
        %394 = vmatpush1.msra.mxu0 %v373
        %395 = vmatprep.subr.mxu0 0.0
        %396 = vmatpush1.msra.mxu0 %v374
        %397 = vmatprep.subr.mxu0 0.0
        %398 = vmatpush1.msra.mxu0 %v375
        %399 = vmatprep.subr.mxu0 0.0
        %400 = vmatpush1.msra.mxu0 %v376
        %401 = vmatprep.subr.mxu0 0.0
        %402 = vmatpush1.msra.mxu0 %v377
        %403 = vmatprep.subr.mxu0 0.0
        %404 = vmatpush1.msra.mxu0 %v378
        %405 = vmatprep.subr.mxu0 0.0
        %406 = vmatpush1.msra.mxu0 %v379
        %407 = vmatprep.subr.mxu0 0.0
        %408 = vmatpush1.msra.mxu0 %v380
        %409 = vmatprep.subr.mxu0 0.0
        %410 = vmatpush1.msra.mxu0 %v381
        %411 = vmatprep.subr.mxu0 0.0
        %412 = vmatpush1.msra.mxu0 %v382
        %413 = vmatprep.subr.mxu0 0.0
        %414 = vmatpush1.msra.mxu0 %v383
        %415 = vmatprep.subr.mxu0 0.0
        %416 = vmatpush1.msra.mxu0 %v384
        %417 = vmatprep.subr.mxu0 0.0
        %418 = vmatpush1.msra.mxu0 0.0
        %419 = vmatprep.subr.mxu0 0.0
        %420 = vmatpush1.msra.mxu0 0.0
        %421 = vmatprep.subr.mxu0 0.0
        %422 = vmatpush1.msra.mxu0 0.0
        %423 = vmatprep.subr.mxu0 0.0
        %424 = vmatpush1.msra.mxu0 0.0
        %425 = vmatprep.subr.mxu0 0.0
        %426 = vmatpush1.msra.mxu0 0.0
        %427 = vmatprep.subr.mxu0 0.0
        %428 = vmatpush1.msra.mxu0 0.0
        %429 = vmatprep.subr.mxu0 0.0
        %430 = vmatpush1.msra.mxu0 0.0
        %431 = vmatprep.subr.mxu0 0.0
        %432 = vmatpush1.msra.mxu0 0.0
        %433 = vmatprep.subr.mxu0 0.0
        %434 = vmatpush1.msra.mxu0 0.0
        %435 = vmatprep.subr.mxu0 0.0
        %436 = vmatpush1.msra.mxu0 0.0
        %437 = vmatprep.subr.mxu0 0.0
        %438 = vmatpush1.msra.mxu0 0.0
        %439 = vmatprep.subr.mxu0 0.0
        %440 = vmatpush1.msra.mxu0 0.0
        %441 = vmatprep.subr.mxu0 0.0
        %442 = vmatpush1.msra.mxu0 0.0
        %443 = vmatprep.subr.mxu0 0.0
        %444 = vmatpush1.msra.mxu0 0.0
        %445 = vmatprep.subr.mxu0 0.0
        %446 = vmatpush1.msra.mxu0 0.0
        %447 = vmatprep.subr.mxu0 0.0
        %448 = vmatpush1.msra.mxu0 0.0
        %449 = vmatprep.mubr.f32.mxu0 0.0
        %450 = vmatmul.mubr.f32.gmra.mrb[0].mxu0 %v367
        %v451 = vpop.f32.mrb[0].mxu0
        %v452 = vadd.f32 0.0, %v451
        %v453 = vpop.f32.mrb[0].mxu0
        %454 = vdwg.mxu0
        %v455 = vadd.f32 %v368, %v452
        %456 = vst [vmem:[#allocation2] sm:$0xff] %v455
        %v457 = vld [vmem:[#allocation3] sm:$0xff]
        %v458 = vld [vmem:[%s347] sm:$0xff]
        %v459 = vld [vmem:[%s347 + $0x8] sm:$0xff]
        %v460 = vld [vmem:[%s347 + $0x10] sm:$0xff]
        %v461 = vld [vmem:[%s347 + $0x18] sm:$0xff]
        %v462 = vld [vmem:[%s347 + $0x20] sm:$0xff]
        %v463 = vld [vmem:[%s347 + $0x28] sm:$0xff]
        %v464 = vld [vmem:[%s347 + $0x30] sm:$0xff]
        %v465 = vld [vmem:[%s347 + $0x38] sm:$0xff]
        %v466 = vld [vmem:[%s347 + $0x40] sm:$0xff]
        %v467 = vld [vmem:[%s347 + $0x48] sm:$0xff]
        %v468 = vld [vmem:[%s347 + $0x50] sm:$0xff]
        %v469 = vld [vmem:[%s347 + $0x58] sm:$0xff]
        %v470 = vld [vmem:[%s347 + $0x60] sm:$0xff]
        %v471 = vld [vmem:[%s347 + $0x68] sm:$0xff]
        %v472 = vld [vmem:[%s347 + $0x70] sm:$0xff]
        %v473 = vld [vmem:[%s347 + $0x78] sm:$0xff]
        %474 = vmatprep.subr.mxu0 0.0
        %475 = vmatpush1.msra.mxu0 %v458
        %476 = vmatprep.subr.mxu0 0.0
        %477 = vmatpush1.msra.mxu0 %v459
        %478 = vmatprep.subr.mxu0 0.0
        %479 = vmatpush1.msra.mxu0 %v460
        %480 = vmatprep.subr.mxu0 0.0
        %481 = vmatpush1.msra.mxu0 %v461
        %482 = vmatprep.subr.mxu0 0.0
        %483 = vmatpush1.msra.mxu0 %v462
        %484 = vmatprep.subr.mxu0 0.0
        %485 = vmatpush1.msra.mxu0 %v463
        %486 = vmatprep.subr.mxu0 0.0
        %487 = vmatpush1.msra.mxu0 %v464
        %488 = vmatprep.subr.mxu0 0.0
        %489 = vmatpush1.msra.mxu0 %v465
        %490 = vmatprep.subr.mxu0 0.0
        %491 = vmatpush1.msra.mxu0 %v466
        %492 = vmatprep.subr.mxu0 0.0
        %493 = vmatpush1.msra.mxu0 %v467
        %494 = vmatprep.subr.mxu0 0.0
        %495 = vmatpush1.msra.mxu0 %v468
        %496 = vmatprep.subr.mxu0 0.0
        %497 = vmatpush1.msra.mxu0 %v469
        %498 = vmatprep.subr.mxu0 0.0
        %499 = vmatpush1.msra.mxu0 %v470
        %500 = vmatprep.subr.mxu0 0.0
        %501 = vmatpush1.msra.mxu0 %v471
        %502 = vmatprep.subr.mxu0 0.0
        %503 = vmatpush1.msra.mxu0 %v472
        %504 = vmatprep.subr.mxu0 0.0
        %505 = vmatpush1.msra.mxu0 %v473
        %506 = vmatprep.subr.mxu0 0.0
        %507 = vmatpush1.msra.mxu0 0.0
        %508 = vmatprep.subr.mxu0 0.0
        %509 = vmatpush1.msra.mxu0 0.0
        %510 = vmatprep.subr.mxu0 0.0
        %511 = vmatpush1.msra.mxu0 0.0
        %512 = vmatprep.subr.mxu0 0.0
        %513 = vmatpush1.msra.mxu0 0.0
        %514 = vmatprep.subr.mxu0 0.0
        %515 = vmatpush1.msra.mxu0 0.0
        %516 = vmatprep.subr.mxu0 0.0
        %517 = vmatpush1.msra.mxu0 0.0
        %518 = vmatprep.subr.mxu0 0.0
        %519 = vmatpush1.msra.mxu0 0.0
        %520 = vmatprep.subr.mxu0 0.0
        %521 = vmatpush1.msra.mxu0 0.0
        %522 = vmatprep.subr.mxu0 0.0
        %523 = vmatpush1.msra.mxu0 0.0
        %524 = vmatprep.subr.mxu0 0.0
        %525 = vmatpush1.msra.mxu0 0.0
        %526 = vmatprep.subr.mxu0 0.0
        %527 = vmatpush1.msra.mxu0 0.0
        %528 = vmatprep.subr.mxu0 0.0
        %529 = vmatpush1.msra.mxu0 0.0
        %530 = vmatprep.subr.mxu0 0.0
        %531 = vmatpush1.msra.mxu0 0.0
        %532 = vmatprep.subr.mxu0 0.0
        %533 = vmatpush1.msra.mxu0 0.0
        %534 = vmatprep.subr.mxu0 0.0
        %535 = vmatpush1.msra.mxu0 0.0
        %536 = vmatprep.subr.mxu0 0.0
        %537 = vmatpush1.msra.mxu0 0.0
        %538 = vmatprep.mubr.f32.mxu0 0.0
        %539 = vmatmul.mubr.f32.gmra.mrb[0].mxu0 %v367
        %v540 = vpop.f32.mrb[0].mxu0
        %v541 = vadd.f32 0.0, %v540
        %v542 = vpop.f32.mrb[0].mxu0
        %543 = vdwg.mxu0
        %v544 = vadd.f32 %v457, %v541
        %vm545 = vcmask 31744
        %546 = vst.msk [vmem:[#allocation3] sm:$0xff] %vm545, %v544
        %p547 = scmp.eq.s32.totalorder %s29, 1
        // Predicated region
        $region49: #{tpu_custom_call.1} parent=39 // pred_check
          %p548 = pneg %p547
        $region50: #{tpu_custom_call.1} parent=39 // pred_check_branch
          %550 = sbr.rel (%p548) target = $region52
        $region51: #{tpu_custom_call.1} parent=39 // pred_region
          %v551 = vld [vmem:[#allocation3] sm:$0xff]
          %v552 = vld [vmem:[%s352] sm:$0xf]
          %v554 = vsel %vm545, %v551, 0
          %vm556 = vcmask 1043456
          %v558 = vsel %vm556, %v552, 0
          %560 = vmatprep.subr.mxu0 0.0
          %561 = vmatpush1.msra.mxu0 %v558
          %562 = vmatprep.subr.mxu0 0.0
          %563 = vmatpush1.msra.mxu0 0.0
          %564 = vmatprep.subr.mxu0 0.0
          %565 = vmatpush1.msra.mxu0 0.0
          %566 = vmatprep.subr.mxu0 0.0
          %567 = vmatpush1.msra.mxu0 0.0
          %568 = vmatprep.subr.mxu0 0.0
          %569 = vmatpush1.msra.mxu0 0.0
          %570 = vmatprep.subr.mxu0 0.0
          %571 = vmatpush1.msra.mxu0 0.0
          %572 = vmatprep.subr.mxu0 0.0
          %573 = vmatpush1.msra.mxu0 0.0
          %574 = vmatprep.subr.mxu0 0.0
          %575 = vmatpush1.msra.mxu0 0.0
          %576 = vmatprep.subr.mxu0 0.0
          %577 = vmatpush1.msra.mxu0 0.0
          %578 = vmatprep.subr.mxu0 0.0
          %579 = vmatpush1.msra.mxu0 0.0
          %580 = vmatprep.subr.mxu0 0.0
          %581 = vmatpush1.msra.mxu0 0.0
          %582 = vmatprep.subr.mxu0 0.0
          %583 = vmatpush1.msra.mxu0 0.0
          %584 = vmatprep.subr.mxu0 0.0
          %585 = vmatpush1.msra.mxu0 0.0
          %586 = vmatprep.subr.mxu0 0.0
          %587 = vmatpush1.msra.mxu0 0.0
          %588 = vmatprep.subr.mxu0 0.0
          %589 = vmatpush1.msra.mxu0 0.0
          %590 = vmatprep.subr.mxu0 0.0
          %591 = vmatpush1.msra.mxu0 0.0
          %592 = vmatprep.subr.mxu0 0.0
          %593 = vmatpush1.msra.mxu0 0.0
          %594 = vmatprep.subr.mxu0 0.0
          %595 = vmatpush1.msra.mxu0 0.0
          %596 = vmatprep.subr.mxu0 0.0
          %597 = vmatpush1.msra.mxu0 0.0
          %598 = vmatprep.subr.mxu0 0.0
          %599 = vmatpush1.msra.mxu0 0.0
          %600 = vmatprep.subr.mxu0 0.0
          %601 = vmatpush1.msra.mxu0 0.0
          %602 = vmatprep.subr.mxu0 0.0
          %603 = vmatpush1.msra.mxu0 0.0
          %604 = vmatprep.subr.mxu0 0.0
          %605 = vmatpush1.msra.mxu0 0.0
          %606 = vmatprep.subr.mxu0 0.0
          %607 = vmatpush1.msra.mxu0 0.0
          %608 = vmatprep.subr.mxu0 0.0
          %609 = vmatpush1.msra.mxu0 0.0
          %610 = vmatprep.subr.mxu0 0.0
          %611 = vmatpush1.msra.mxu0 0.0
          %612 = vmatprep.subr.mxu0 0.0
          %613 = vmatpush1.msra.mxu0 0.0
          %614 = vmatprep.subr.mxu0 0.0
          %615 = vmatpush1.msra.mxu0 0.0
          %616 = vmatprep.subr.mxu0 0.0
          %617 = vmatpush1.msra.mxu0 0.0
          %618 = vmatprep.subr.mxu0 0.0
          %619 = vmatpush1.msra.mxu0 0.0
          %620 = vmatprep.subr.mxu0 0.0
          %621 = vmatpush1.msra.mxu0 0.0
          %622 = vmatprep.subr.mxu0 0.0
          %623 = vmatpush1.msra.mxu0 0.0
          %624 = vmatprep.mubr.f32.mxu0 0.0
          %625 = vmatmul.mubr.f32.gmra.mrb[0].mxu0 %v554
          %v626 = vpop.f32.mrb[0].mxu0
          %v627 = vadd.f32 0.0, %v626
          %v628 = vpop.f32.mrb[0].mxu0
          %629 = vdwg.mxu0
          %v630 = vld [vmem:[#allocation2] sm:$0xff]
          %v631 = vmul.f32 %v627, 8.0
          %v632 = vadd.f32 %v630, %v631
          %633 = vst [vmem:[%s330] sm:$0xff] %v632
        $region52: #{tpu_custom_call.1} parent=39 // pred_fallthru
          _
        %s634 = sand.u32 %s185, 1
        %s635 = scalar_lea.sflag [#allocation6], %s634
        %s636 = sand.u32 %s185, 1
        %s637 = smul.addr %s636, 8
        %s638 = scalar_lea.vmem [#allocation7], %s637
        // Predicated region
        $region53: #{tpu_custom_call.1} parent=39 // pred_check
          %p639 = pneg %p195
        $region54: #{tpu_custom_call.1} parent=39 // pred_check_branch
          %641 = sbr.rel (%p639) target = $region56
        $region55: #{tpu_custom_call.1} parent=39 // pred_region
          %s643 = ssub.s32 128, 128
          %644 = vsyncadd %s635, %s643
          %s645 = smul.addr %s27, 2
          %s646 = sadd.s32 %s28, %s645
          %s647 = smul.addr %s646, 128
          %s648 = scalar_lea.hbm %s5, %s647
          %s650 = sshll.u32 %s638, 4
          %s651 = int_to_ptr.vmem [resolvable:$true] %s650
          %653 = dma.vmem_to_hbm [thread:$0]  %s651, 128, %s648, %s635
        $region56: #{tpu_custom_call.1} parent=39 // pred_fallthru
          _
      $region40: #{tpu_custom_call.1} parent=5 // pred_fallthru
        _
      %p654 = scmp.le.s32.totalorder 2, %s17
      // Predicated region
      $region57: #{tpu_custom_call.1} parent=5 // pred_check
        %p655 = pneg %p654
      $region58: #{tpu_custom_call.1} parent=5 // pred_check_branch
        %657 = sbr.rel (%p655) target = $region60
      $region59: #{tpu_custom_call.1} parent=5 // pred_region
        %s658 = ssub.s32 %s17, 2
        // Predicated region
        $region61: #{tpu_custom_call.1} parent=59 // pred_check
          %p659 = pneg %p201
        $region62: #{tpu_custom_call.1} parent=59 // pred_check_branch
          %661 = sbr.rel (%p659) target = $region64
        $region63: #{tpu_custom_call.1} parent=59 // pred_region
          %s662 = sand.u32 %s186, 1
          %s663 = scalar_lea.sflag [#allocation6], %s662
          %s664 = sand.u32 %s186, 1
          %s665 = smul.addr %s664, 8
          %s666 = scalar_lea.vmem [#allocation7], %s665
          %667 = dma.done %s663, 128
        $region64: #{tpu_custom_call.1} parent=59 // pred_fallthru
          _
      $region60: #{tpu_custom_call.1} parent=5 // pred_fallthru
        _
    $region6: #{tpu_custom_call.1} parent=1 // loop_footer
      %s21 = sadd.s32 1, %s17
    $region7: #{tpu_custom_call.1} parent=1 // loop_footer_branch
      %16 = sbr.rel target = $region3
    $region8: #{tpu_custom_call.1} parent=1 // loop_exit
      _
    %668 = vsyncpa [#allocation5], 1
    %s669 = scalar_lea.sflag [#allocation5], 1
    %670 = vsyncpa %s669, 1
    %671 = vsyncpa [#allocation6], 1
    %s672 = scalar_lea.sflag [#allocation6], 1
    %673 = vsyncpa %s672, 1

</llo_original>
